<compile_context>
chip_gen: v7x
topology: tpu7x:2x2x1
jax: 0.10.0
libtpu: 0.0.40
codegen_flags: <defaults>
</compile_context>

<pallas_src>
import functools

import jax
import jax.numpy as jnp
from jax.experimental import pallas as pl
from jax.experimental.pallas import tpu as pltpu

_SUB = 8                    # sublanes per vreg tile
_LANE = 128                 # lanes per vreg tile
_ALIGN = _SUB * _LANE       # 1024-element alignment for the (rows, 128) reshape
_MAX_TILE_ROWS = 2048       # 2048*128*4 B = 1 MiB per input block


def _dos_loss_kernel(p_ref, g1_ref, g2_ref, out_ref, *, n, tile_rows, inner_tiles):
    """Accumulate sum(g2 + p*(g1-g2)) into a per-core (1, 8, 128) accumulator."""
    c = pl.program_id(0)    # partial / core index   ("parallel")
    i = pl.program_id(1)    # tile index within core ("arbitrary" reduction)

    @pl.when(i == 0)
    def _init():
        out_ref[...] = jnp.zeros_like(out_ref)

    p = p_ref[...]
    g1 = g1_ref[...]
    g2 = g2_ref[...]
    # g1*p + g2*(1-p) == g2 + p*(g1 - g2)  (one fewer VALU op per element)
    term = g2 + p * (g1 - g2)

    def _accumulate(vals):
        # Fold the (tile_rows, 128) block into the (8, 128) accumulator with
        # elementwise vreg adds only; the final cross-lane reduce is done once
        # in the wrapper.
        out_ref[...] += jnp.sum(vals.reshape(-1, _SUB, _LANE), axis=0, keepdims=True)

    logical_tile = c * inner_tiles + i
    row0 = logical_tile * tile_rows
    tile_fully_valid = (row0 + tile_rows) * _LANE <= n

    @pl.when(tile_fully_valid)
    def _fast_path():
        _accumulate(term)

    @pl.when(jnp.logical_not(tile_fully_valid))
    def _masked_tail():
        rid = jax.lax.broadcasted_iota(jnp.int32, (tile_rows, _LANE), 0)
        lid = jax.lax.broadcasted_iota(jnp.int32, (tile_rows, _LANE), 1)
        gidx = (row0 + rid) * _LANE + lid         # global element index
        _accumulate(jnp.where(gidx < n, term, 0.0))


def dos_custom_loss(predicted: jax.Array, g1: jax.Array, g2: jax.Array) -> jax.Array:
    """Monte-Carlo loss from the Deep Optimal Stopping paper (scalar float32)."""
    p = jnp.squeeze(predicted).astype(jnp.float32).reshape(-1)
    a = jnp.squeeze(g1).astype(jnp.float32).reshape(-1)
    b = jnp.squeeze(g2).astype(jnp.float32).reshape(-1)

    n = p.shape[0]
    if n == 0:
        # torch.mean over an empty tensor -> NaN
        return jnp.float32(jnp.nan)

    # Minimal alignment pad (<= 1023 elements) so the flat vectors reshape to
    # (rows, 128) with rows % 8 == 0. Values in the pad region are irrelevant:
    # the kernel masks against the true n.
    rem = n % _ALIGN
    if rem:
        pad = _ALIGN - rem
        p = jnp.pad(p, (0, pad))
        a = jnp.pad(a, (0, pad))
        b = jnp.pad(b, (0, pad))
    rows = ((n + _ALIGN - 1) // _ALIGN) * _SUB

    p2 = p.reshape(rows, _LANE)
    a2 = a.reshape(rows, _LANE)
    b2 = b.reshape(rows, _LANE)

    tile_rows = min(_MAX_TILE_ROWS, rows)          # full array or 1 MiB tiles
    n_tiles = pl.cdiv(rows, tile_rows)
    num_partials = 2 if n_tiles >= 2 else 1        # 2 TensorCores on v7x
    inner_tiles = pl.cdiv(n_tiles, num_partials)
    max_block = n_tiles - 1

    def in_map(c, i):
        # Clamp the (possibly) overhanging last step of the second partial to
        # the last real tile; its contribution is masked to zero in-kernel.
        return (jnp.minimum(c * inner_tiles + i, max_block), 0)

    kernel = functools.partial(
        _dos_loss_kernel, n=n, tile_rows=tile_rows, inner_tiles=inner_tiles
    )

    partials = pl.pallas_call(
        kernel,
        out_shape=jax.ShapeDtypeStruct((num_partials, _SUB, _LANE), jnp.float32),
        grid_spec=pltpu.PrefetchScalarGridSpec(
            num_scalar_prefetch=0,
            grid=(num_partials, inner_tiles),
            in_specs=[
                pl.BlockSpec((tile_rows, _LANE), in_map),
                pl.BlockSpec((tile_rows, _LANE), in_map),
                pl.BlockSpec((tile_rows, _LANE), in_map),
            ],
            out_specs=pl.BlockSpec((1, _SUB, _LANE), lambda c, i: (c, 0, 0)),
        ),
        compiler_params=pltpu.CompilerParams(
            dimension_semantics=("parallel", "arbitrary"),
        ),
    )(p2, a2, b2)

    # Single cross-lane reduce + normalization, outside the hot loop.
    return jnp.sum(partials) / jnp.float32(n)


def _reference_loss(predicted, g1, g2):
    return jnp.mean(
        jnp.squeeze(g1) * jnp.squeeze(predicted)
        + jnp.squeeze(g2) * (1.0 - jnp.squeeze(predicted))
    )


if __name__ == "__main__":
    loss_fn = jax.jit(dos_custom_loss)

    key = jax.random.PRNGKey(0)

    # --- primary check: DOS-style small batch (batch, 1) ---
    kp, k1, k2 = jax.random.split(key, 3)
    batch = 128
    predicted = jax.nn.sigmoid(jax.random.normal(kp, (batch, 1), dtype=jnp.float32))
    g1 = jax.random.normal(k1, (batch, 1), dtype=jnp.float32)
    g2 = jax.random.normal(k2, (batch, 1), dtype=jnp.float32)

    loss = jax.block_until_ready(loss_fn(predicted, g1, g2))
    ref = _reference_loss(predicted, g1, g2)
    assert jnp.allclose(loss, ref, rtol=1e-5, atol=1e-5), (loss, ref)

    # --- secondary check: exercises multi-tile grid, dual partials, tail mask ---
    kp2, k12, k22 = jax.random.split(jax.random.PRNGKey(1), 3)
    big = 700_001  # not a multiple of 1024 -> alignment pad + masked tail tile
    predicted_b = jax.nn.sigmoid(jax.random.normal(kp2, (big, 1), dtype=jnp.float32))
    g1_b = jax.random.normal(k12, (big, 1), dtype=jnp.float32)
    g2_b = jax.random.normal(k22, (big, 1), dtype=jnp.float32)

    loss_b = jax.block_until_ready(loss_fn(predicted_b, g1_b, g2_b))
    ref_b = _reference_loss(predicted_b, g1_b, g2_b)
    assert jnp.allclose(loss_b, ref_b, rtol=1e-5, atol=1e-5), (loss_b, ref_b)

    print("KERNEL_OK")
</pallas_src>

<mosaic_0001>
module attributes {stable_mosaic.version = 11 : i64} {
  func.func @_dos_loss_kernel(%arg0: i32, %arg1: i32, %arg2: memref<8x128xf32, #tpu.memory_space<vmem>>, %arg3: memref<8x128xf32, #tpu.memory_space<vmem>>, %arg4: memref<8x128xf32, #tpu.memory_space<vmem>>, %arg5: memref<1x8x128xf32, #tpu.memory_space<vmem>>) attributes {dimension_semantics = [#tpu.dimension_semantics<parallel>, #tpu.dimension_semantics<arbitrary>], iteration_bounds = array<i64: 1, 1>, scalar_prefetch = 0 : i64, scratch_operands = 0 : i64, tpu.core_type = #tpu.core_type<tc>, window_params = [{transform_indices = @transform_0, window_bounds = array<i64: 8, 128>}, {transform_indices = @transform_1, window_bounds = array<i64: 8, 128>}, {transform_indices = @transform_2, window_bounds = array<i64: 8, 128>}, {transform_indices = @transform_3, window_bounds = array<i64: 1, 8, 128>}]} {
    %c0_i32 = arith.constant 0 : i32
    %0 = arith.cmpi eq, %arg1, %c0_i32 : i32
    %1 = arith.extui %0 : i1 to i32
    %c0_i32_0 = arith.constant 0 : i32
    %2 = arith.cmpi ne, %1, %c0_i32_0 : i32
    scf.if %2 {
      %cst = arith.constant 0.000000e+00 : f32
      %20 = vector.broadcast %cst : f32 to vector<1x8x128xf32>
      %c0_10 = arith.constant 0 : index
      %c0_11 = arith.constant 0 : index
      %c0_12 = arith.constant 0 : index
      %21 = vector.load %arg5[%c0_10, %c0_11, %c0_12] : memref<1x8x128xf32, #tpu.memory_space<vmem>>, vector<1x8x128xf32>
      tpu.vector_store %arg5[%c0_10, %c0_11, %c0_12], %20 {strides = array<i32>} : memref<1x8x128xf32, #tpu.memory_space<vmem>>, vector<1x8x128xf32>,
    } else {
    }
    %c0 = arith.constant 0 : index
    %c0_1 = arith.constant 0 : index
    %3 = vector.load %arg2[%c0, %c0_1] : memref<8x128xf32, #tpu.memory_space<vmem>>, vector<8x128xf32>
    %c0_2 = arith.constant 0 : index
    %c0_3 = arith.constant 0 : index
    %4 = vector.load %arg3[%c0_2, %c0_3] : memref<8x128xf32, #tpu.memory_space<vmem>>, vector<8x128xf32>
    %c0_4 = arith.constant 0 : index
    %c0_5 = arith.constant 0 : index
    %5 = vector.load %arg4[%c0_4, %c0_5] : memref<8x128xf32, #tpu.memory_space<vmem>>, vector<8x128xf32>
    %6 = arith.subf %4, %5 : vector<8x128xf32>
    %7 = arith.mulf %3, %6 : vector<8x128xf32>
    %8 = arith.addf %5, %7 : vector<8x128xf32>
    %c1_i32 = arith.constant 1 : i32
    %9 = arith.muli %arg0, %c1_i32 : i32
    %10 = arith.addi %9, %arg1 : i32
    %c8_i32 = arith.constant 8 : i32
    %11 = arith.muli %10, %c8_i32 : i32
    %c8_i32_6 = arith.constant 8 : i32
    %12 = arith.addi %11, %c8_i32_6 : i32
    %c128_i32 = arith.constant 128 : i32
    %13 = arith.muli %12, %c128_i32 : i32
    %c128_i32_7 = arith.constant 128 : i32
    %14 = arith.cmpi sle, %13, %c128_i32_7 : i32
    %15 = arith.extui %14 : i1 to i32
    %c0_i32_8 = arith.constant 0 : i32
    %16 = arith.cmpi ne, %15, %c0_i32_8 : i32
    scf.if %16 {
      %c0_10 = arith.constant 0 : index
      %c0_11 = arith.constant 0 : index
      %c0_12 = arith.constant 0 : index
      %20 = vector.load %arg5[%c0_10, %c0_11, %c0_12] : memref<1x8x128xf32, #tpu.memory_space<vmem>>, vector<1x8x128xf32>
      %21 = vector.shape_cast %8 : vector<8x128xf32> to vector<1x8x128xf32>
      %cst = arith.constant dense<0.000000e+00> : vector<8x128xf32>
      %22 = vector.multi_reduction <add>, %21, %cst [0] : vector<1x8x128xf32> to vector<8x128xf32>
      %23 = vector.shape_cast %22 : vector<8x128xf32> to vector<1x8x128xf32>
      %24 = arith.addf %20, %23 : vector<1x8x128xf32>
      %c0_13 = arith.constant 0 : index
      %c0_14 = arith.constant 0 : index
      %c0_15 = arith.constant 0 : index
      %25 = vector.load %arg5[%c0_13, %c0_14, %c0_15] : memref<1x8x128xf32, #tpu.memory_space<vmem>>, vector<1x8x128xf32>
      tpu.vector_store %arg5[%c0_13, %c0_14, %c0_15], %24 {strides = array<i32>} : memref<1x8x128xf32, #tpu.memory_space<vmem>>, vector<1x8x128xf32>,
    } else {
    }
    %true = arith.constant true
    %17 = arith.xori %14, %true : i1
    %18 = arith.extui %17 : i1 to i32
    %c0_i32_9 = arith.constant 0 : i32
    %19 = arith.cmpi ne, %18, %c0_i32_9 : i32
    scf.if %19 {
      %20 = tpu.iota {dimensions = array<i32: 0>} : vector<8x128xi32>
      %21 = tpu.iota {dimensions = array<i32: 1>} : vector<8x128xi32>
      %22 = vector.broadcast %11 : i32 to vector<8x128xi32>
      %23 = arith.addi %22, %20 : vector<8x128xi32>
      %c128_i32_10 = arith.constant 128 : i32
      %24 = vector.broadcast %c128_i32_10 : i32 to vector<8x128xi32>
      %25 = arith.muli %23, %24 : vector<8x128xi32>
      %26 = arith.addi %25, %21 : vector<8x128xi32>
      %c128_i32_11 = arith.constant 128 : i32
      %27 = vector.broadcast %c128_i32_11 : i32 to vector<8x128xi32>
      %28 = arith.cmpi slt, %26, %27 : vector<8x128xi32>
      %cst = arith.constant 0.000000e+00 : f32
      %29 = vector.broadcast %cst : f32 to vector<8x128xf32>
      %30 = arith.select %28, %8, %29 : vector<8x128xi1>, vector<8x128xf32>
      %c0_12 = arith.constant 0 : index
      %c0_13 = arith.constant 0 : index
      %c0_14 = arith.constant 0 : index
      %31 = vector.load %arg5[%c0_12, %c0_13, %c0_14] : memref<1x8x128xf32, #tpu.memory_space<vmem>>, vector<1x8x128xf32>
      %32 = vector.shape_cast %30 : vector<8x128xf32> to vector<1x8x128xf32>
      %cst_15 = arith.constant dense<0.000000e+00> : vector<8x128xf32>
      %33 = vector.multi_reduction <add>, %32, %cst_15 [0] : vector<1x8x128xf32> to vector<8x128xf32>
      %34 = vector.shape_cast %33 : vector<8x128xf32> to vector<1x8x128xf32>
      %35 = arith.addf %31, %34 : vector<1x8x128xf32>
      %c0_16 = arith.constant 0 : index
      %c0_17 = arith.constant 0 : index
      %c0_18 = arith.constant 0 : index
      %36 = vector.load %arg5[%c0_16, %c0_17, %c0_18] : memref<1x8x128xf32, #tpu.memory_space<vmem>>, vector<1x8x128xf32>
      tpu.vector_store %arg5[%c0_16, %c0_17, %c0_18], %35 {strides = array<i32>} : memref<1x8x128xf32, #tpu.memory_space<vmem>>, vector<1x8x128xf32>,
    } else {
    }
    return
  }
  func.func @transform_0(%arg0: i32, %arg1: i32) -> (i32, i32) {
    %c1_i32 = arith.constant 1 : i32
    %0 = arith.muli %arg0, %c1_i32 : i32
    %1 = arith.addi %0, %arg1 : i32
    %c0_i32 = arith.constant 0 : i32
    %2 = arith.minsi %1, %c0_i32 : i32
    %c0_i32_0 = arith.constant 0 : i32
    %c0_i32_1 = arith.constant 0 : i32
    return %2, %c0_i32_0 : i32, i32
  }
  func.func @transform_1(%arg0: i32, %arg1: i32) -> (i32, i32) {
    %c1_i32 = arith.constant 1 : i32
    %0 = arith.muli %arg0, %c1_i32 : i32
    %1 = arith.addi %0, %arg1 : i32
    %c0_i32 = arith.constant 0 : i32
    %2 = arith.minsi %1, %c0_i32 : i32
    %c0_i32_0 = arith.constant 0 : i32
    %c0_i32_1 = arith.constant 0 : i32
    return %2, %c0_i32_0 : i32, i32
  }
  func.func @transform_2(%arg0: i32, %arg1: i32) -> (i32, i32) {
    %c1_i32 = arith.constant 1 : i32
    %0 = arith.muli %arg0, %c1_i32 : i32
    %1 = arith.addi %0, %arg1 : i32
    %c0_i32 = arith.constant 0 : i32
    %2 = arith.minsi %1, %c0_i32 : i32
    %c0_i32_0 = arith.constant 0 : i32
    %c0_i32_1 = arith.constant 0 : i32
    return %2, %c0_i32_0 : i32, i32
  }
  func.func @transform_3(%arg0: i32, %arg1: i32) -> (i32, i32, i32) {
    %c0_i32 = arith.constant 0 : i32
    %c0_i32_0 = arith.constant 0 : i32
    %c0_i32_1 = arith.constant 0 : i32
    return %arg0, %c0_i32, %c0_i32_0 : i32, i32, i32
  }
}

</mosaic_0001>

<llo_original>
// kernel: dos_custom_loss.1
$region0: #{dos_custom_loss.1}
  #allocation0 [shape = 'u32[]', space=smem, size = 0x4, offset = 0x4, fixed_abs, tag = 'smem constant byte address 0x4 - core index']
  #allocation1 [shape = 'u32[144,128]{1,0:T(1,128)}', space=vmem, size = 0x12000, scoped, tag = 'internal scratch']
  %s0 = inlined_call_operand.vmem [shape: f32[8,128], index: 0, kind: input, shape index: {}]
  %s1 = inlined_call_operand.vmem [shape: f32[8,128], index: 1, kind: input, shape index: {}]
  %s2 = inlined_call_operand.vmem [shape: f32[8,128], index: 2, kind: input, shape index: {}]
  %s3 = inlined_call_operand.vmem [shape: f32[1,8,128], index: 3, kind: output, shape index: {}]
  %s4 = sld [smem:[#allocation0]]
  $region34: #{dos_custom_loss.1} parent=0
    _
  %s6 = ssub.s32 1, %s4
  %s7 = scalar_select 0, %s6, %s4
  // Predicated region
  $region2: #{dos_custom_loss.1} parent=0 // pred_check
    _
  $region3: #{dos_custom_loss.1} parent=0 // pred_check_branch
    %9 = sbr.rel (0) target = $region5
  $region4: #{dos_custom_loss.1} parent=0 // pred_region
    %s10 = sadd.s32 0, 0
    %p11 = scmp.lt.s32.totalorder %s10, 0
    %s12 = scalar_select %p11, %s10, 0
    %p13 = scmp.lt.s32.totalorder %s12, 0
    %s14 = scalar_select %p13, %s12, 0
    %s15 = smul.addr %s14, 8
    %s16 = scalar_lea.vmem %s0, %s15
    %s17 = sadd.s32 0, 0
    %p18 = scmp.lt.s32.totalorder %s17, 0
    %s19 = scalar_select %p18, %s17, 0
  $region5: #{dos_custom_loss.1} parent=0 // pred_fallthru
    _
  // Predicated region
  $region6: #{dos_custom_loss.1} parent=0 // pred_check
    _
  $region7: #{dos_custom_loss.1} parent=0 // pred_check_branch
    %21 = sbr.rel (0) target = $region9
  $region8: #{dos_custom_loss.1} parent=0 // pred_region
    %s22 = sadd.s32 0, 0
    %p23 = scmp.lt.s32.totalorder %s22, 0
    %s24 = scalar_select %p23, %s22, 0
    %p25 = scmp.lt.s32.totalorder %s24, 0
    %s26 = scalar_select %p25, %s24, 0
    %s27 = smul.addr %s26, 8
    %s28 = scalar_lea.vmem %s1, %s27
    %s29 = sadd.s32 0, 0
    %p30 = scmp.lt.s32.totalorder %s29, 0
    %s31 = scalar_select %p30, %s29, 0
  $region9: #{dos_custom_loss.1} parent=0 // pred_fallthru
    _
  // Predicated region
  $region10: #{dos_custom_loss.1} parent=0 // pred_check
    _
  $region11: #{dos_custom_loss.1} parent=0 // pred_check_branch
    %33 = sbr.rel (0) target = $region13
  $region12: #{dos_custom_loss.1} parent=0 // pred_region
    %s34 = sadd.s32 0, 0
    %p35 = scmp.lt.s32.totalorder %s34, 0
    %s36 = scalar_select %p35, %s34, 0
    %p37 = scmp.lt.s32.totalorder %s36, 0
    %s38 = scalar_select %p37, %s36, 0
    %s39 = smul.addr %s38, 8
    %s40 = scalar_lea.vmem %s2, %s39
    %s41 = sadd.s32 0, 0
    %p42 = scmp.lt.s32.totalorder %s41, 0
    %s43 = scalar_select %p42, %s41, 0
  $region13: #{dos_custom_loss.1} parent=0 // pred_fallthru
    _
  %s44 = sadd.s32 0, 0
  %p45 = scmp.lt.s32.totalorder %s44, 0
  %s46 = scalar_select %p45, %s44, 0
  %p47 = scmp.lt.s32.totalorder %s46, 0
  %s48 = scalar_select %p47, %s46, 0
  %s49 = smul.addr %s48, 8
  %s50 = scalar_lea.vmem %s0, %s49
  %s51 = sadd.s32 0, 0
  %p52 = scmp.lt.s32.totalorder %s51, 0
  %s53 = scalar_select %p52, %s51, 0
  %p54 = scmp.lt.s32.totalorder %s53, 0
  %s55 = scalar_select %p54, %s53, 0
  %s56 = smul.addr %s55, 8
  %s57 = scalar_lea.vmem %s1, %s56
  %s58 = sadd.s32 0, 0
  %p59 = scmp.lt.s32.totalorder %s58, 0
  %s60 = scalar_select %p59, %s58, 0
  %p61 = scmp.lt.s32.totalorder %s60, 0
  %s62 = scalar_select %p61, %s60, 0
  %s63 = smul.addr %s62, 8
  %s64 = scalar_lea.vmem %s2, %s63
  %s65 = sadd.s32 0, 0
  %p66 = scmp.lt.s32.totalorder %s65, 0
  %s67 = scalar_select %p66, %s65, 0
  %p68 = scmp.lt.s32.totalorder %s67, 0
  %s69 = scalar_select %p68, %s67, 0
  %s70 = smul.addr %s69, 8
  %s71 = scalar_lea.vmem %s0, %s70
  %s72 = sadd.s32 0, 0
  %p73 = scmp.lt.s32.totalorder %s72, 0
  %s74 = scalar_select %p73, %s72, 0
  %s75 = sadd.s32 0, 0
  %p76 = scmp.lt.s32.totalorder %s75, 0
  %s77 = scalar_select %p76, %s75, 0
  %p78 = scmp.lt.s32.totalorder %s77, 0
  %s79 = scalar_select %p78, %s77, 0
  %s80 = smul.addr %s79, 8
  %s81 = scalar_lea.vmem %s1, %s80
  %s82 = sadd.s32 0, 0
  %p83 = scmp.lt.s32.totalorder %s82, 0
  %s84 = scalar_select %p83, %s82, 0
  %s85 = sadd.s32 0, 0
  %p86 = scmp.lt.s32.totalorder %s85, 0
  %s87 = scalar_select %p86, %s85, 0
  %p88 = scmp.lt.s32.totalorder %s87, 0
  %s89 = scalar_select %p88, %s87, 0
  %s90 = smul.addr %s89, 8
  %s91 = scalar_lea.vmem %s2, %s90
  %s92 = sadd.s32 0, 0
  %p93 = scmp.lt.s32.totalorder %s92, 0
  %s94 = scalar_select %p93, %s92, 0
  %p95 = scmp.eq.s32.totalorder 0, 0
  // Predicated region
  $region14: #{dos_custom_loss.1} parent=0 // pred_check
    %p96 = pneg %p95
  $region15: #{dos_custom_loss.1} parent=0 // pred_check_branch
    %98 = sbr.rel (%p96) target = $region17
  $region16: #{dos_custom_loss.1} parent=0 // pred_region
    %99 = vst [vmem:[%s3] sm:$0xff] 0.0
  $region17: #{dos_custom_loss.1} parent=0 // pred_fallthru
    _
  %v100 = vld [vmem:[%s71] sm:$0xff]
  %v101 = vld [vmem:[%s81] sm:$0xff]
  %v102 = vld [vmem:[%s91] sm:$0xff]
  %v103 = vsub.f32 %v101, %v102
  %v104 = vmul.f32 %v100, %v103
  %v105 = vadd.f32 %v102, %v104
  %s106 = sadd.s32 0, 0
  %s107 = smul.u32 %s106, 8
  %s108 = sadd.s32 %s107, 8
  %s109 = smul.u32 %s108, 128
  %p110 = scmp.le.s32.totalorder %s109, 128
  // Predicated region
  $region18: #{dos_custom_loss.1} parent=0 // pred_check
    %p111 = pneg %p110
  $region19: #{dos_custom_loss.1} parent=0 // pred_check_branch
    %113 = sbr.rel (%p111) target = $region21
  $region20: #{dos_custom_loss.1} parent=0 // pred_region
    %v114 = vld [vmem:[%s3] sm:$0xff]
    %v115 = vadd.f32 %v105, 0.0
    %v116 = vadd.f32 %v114, %v115
    %117 = vst [vmem:[%s3] sm:$0xff] %v116
  $region21: #{dos_custom_loss.1} parent=0 // pred_fallthru
    _
  %p118 = scmp.gt.s32.totalorder %s109, 128
  // Predicated region
  $region22: #{dos_custom_loss.1} parent=0 // pred_check
    %p119 = pneg %p118
  $region23: #{dos_custom_loss.1} parent=0 // pred_check_branch
    %121 = sbr.rel (%p119) target = $region25
  $region24: #{dos_custom_loss.1} parent=0 // pred_region
    %v122 = vlaneseq
    %v123 = vshrl.u32 %v122, 7
    %v124 = vlaneseq
    %v125 = vand.u32 %v124, 127
    %v126 = vstv %s107
    %v127 = vadd.s32 %v126, %v123
    %v128 = vmul.u32 %v127, 128
    %v129 = vadd.s32 %v128, %v125
    %vm130 = vcmp.lt.s32.totalorder %v129, 128
    %v131 = vsel %vm130, %v105, 0.0
    %v132 = vld [vmem:[%s3] sm:$0xff]
    %v133 = vadd.f32 %v131, 0.0
    %v134 = vadd.f32 %v132, %v133
    %135 = vst [vmem:[%s3] sm:$0xff] %v134
  $region25: #{dos_custom_loss.1} parent=0 // pred_fallthru
    _
  // Predicated region
  $region26: #{dos_custom_loss.1} parent=0 // pred_check
    _
  $region27: #{dos_custom_loss.1} parent=0 // pred_check_branch
    %137 = sbr.rel (0) target = $region29
  $region28: #{dos_custom_loss.1} parent=0 // pred_region
    _
  $region29: #{dos_custom_loss.1} parent=0 // pred_fallthru
    _
  // Predicated region
  $region30: #{dos_custom_loss.1} parent=0 // pred_check
    _
  $region31: #{dos_custom_loss.1} parent=0 // pred_check_branch
    %139 = sbr.rel (0) target = $region33
  $region32: #{dos_custom_loss.1} parent=0 // pred_region
    _
  $region33: #{dos_custom_loss.1} parent=0 // pred_fallthru
    _

</llo_original>
